<compile_context>
chip_gen: v6e
topology: v6e:2x2x1
jax: 0.10.0
libtpu: 0.0.40
codegen_flags: <defaults>
</compile_context>

<pallas_src>
import jax
import jax.numpy as jnp
from jax.experimental import pallas as pl
from jax.experimental.pallas import tpu as pltpu


def _tpu_defaults():
    """Per-generation (num_cores, target_block_bytes, vmem_limit_bytes)."""
    kind = ""
    try:
        kind = jax.devices()[0].device_kind.lower()
    except Exception:  # pragma: no cover - non-TPU / interpret fallback
        pass
    mib = 1024 * 1024
    if "v7" in kind:
        # 2 TensorCores/chip, 64 MiB VMEM, ~3.2 TB/s HBM: larger tiles to
        # amortize the ~0.35us/step overhead, but stay inside 64 MiB.
        return 2, 8 * mib, 48 * mib
    if "v6" in kind:
        # single TC, 128 MiB VMEM: plenty of headroom.
        return 1, 8 * mib, 64 * mib
    if "v5p" in kind:
        return 2, 4 * mib, None
    if "v5" in kind:  # v5e / "v5 lite": single TC, 128 MiB VMEM
        return 1, 8 * mib, 64 * mib
    if "v4" in kind or "v3" in kind or "v2" in kind:
        return 2, 4 * mib, None
    return 1, 4 * mib, None


def _make_kernel(bm, spatial, m, g, blocks_per_core, needs_guard):
    ns = len(spatial)

    def _accumulate(tsum_ref, msesum_ref, msetsum_ref, o, t):
        diff = t - o
        mse = diff * diff
        mset = mse * t
        # Row-axis partial reductions only (pure VPU vreg adds); the single
        # cross-lane reduction happens once, outside the kernel.
        if g == 1:
            pt = jnp.sum(t, axis=0, keepdims=True)
            pmse = jnp.sum(mse, axis=0, keepdims=True)
            pmset = jnp.sum(mset, axis=0, keepdims=True)
        else:
            shp = (bm // g, g) + spatial
            pt = jnp.sum(t.reshape(shp), axis=0)
            pmse = jnp.sum(mse.reshape(shp), axis=0)
            pmset = jnp.sum(mset.reshape(shp), axis=0)
        tsum_ref[...] += pt[None]
        msesum_ref[...] += pmse[None]
        msetsum_ref[...] += pmset[None]

    def kernel(out_ref, tgt_ref, tsum_ref, msesum_ref, msetsum_ref):
        p = pl.program_id(0)   # core ("parallel") axis
        j = pl.program_id(1)   # row-block ("arbitrary" / reduction) axis

        @pl.when(j == 0)
        def _init():
            tsum_ref[...] = jnp.zeros_like(tsum_ref)
            msesum_ref[...] = jnp.zeros_like(msesum_ref)
            msetsum_ref[...] = jnp.zeros_like(msetsum_ref)

        if not needs_guard:
            # Even batch split: every step is the unmasked fast path.
            _accumulate(tsum_ref, msesum_ref, msetsum_ref,
                        out_ref[...].astype(jnp.float32),
                        tgt_ref[...].astype(jnp.float32))
            return

        blk = p * blocks_per_core + j          # logical (unclamped) block
        row0 = blk * bm

        @pl.when(row0 + bm <= m)
        def _full_block():                     # hot path: no masking at all
            _accumulate(tsum_ref, msesum_ref, msetsum_ref,
                        out_ref[...].astype(jnp.float32),
                        tgt_ref[...].astype(jnp.float32))

        @pl.when(jnp.logical_and(row0 < m, row0 + bm > m))
        def _partial_block():                  # cold path: last partial block
            o = out_ref[...].astype(jnp.float32)
            t = tgt_ref[...].astype(jnp.float32)
            # Row validity only depends on the sublane index: (bm, 1, ...)
            # iota, broadcast across lanes by jnp.where.  Zeroing o and t is
            # enough to zero diff/mse/mset (where is a select, so garbage in
            # the padded region cannot leak).
            rows = row0 + jax.lax.broadcasted_iota(
                jnp.int32, (bm,) + (1,) * ns, 0)
            valid = rows < m
            zero = jnp.float32(0.0)
            _accumulate(tsum_ref, msesum_ref, msetsum_ref,
                        jnp.where(valid, o, zero),
                        jnp.where(valid, t, zero))
        # Phantom blocks of the core split (row0 >= m) fall through both
        # branches and contribute nothing (their DMA is clamped onto a valid
        # block by the index_map).

    return kernel


def segment_mse_loss(output, c, target, *, block_rows=None, num_cores=None,
                     target_block_bytes=None, vmem_limit_bytes=None):
    """Pallas implementation of SegmentMSELoss.forward(output, c, target).

    output: (m, C, h, w) float array
    c     : python int, 1-based channel index (static)
    target: (m, h, w) float array (segmentation mask)
    """
    # TODO(synk): a traced (non-static) channel index would need scalar
    # prefetch; the module's channel index is a static python int, so it is
    # baked into the BlockSpec index_map (no SMEM prefetch DMA).
    chan = int(c) - 1
    m, C, h, w = output.shape
    assert target.shape == (m, h, w)
    hw = h * w

    auto_cores, auto_tile, auto_vmem = _tpu_defaults()
    if num_cores is None:
        num_cores = auto_cores
    if target_block_bytes is None:
        target_block_bytes = auto_tile
    if vmem_limit_bytes is None:
        vmem_limit_bytes = auto_vmem

    out_isz = jnp.dtype(output.dtype).itemsize
    tgt_isz = jnp.dtype(target.dtype).itemsize

    # Lane-dense channel selection whenever h*w is lane-aligned (or C == 1):
    # fuse (C,h,w) -> C*h*w and take block `chan` of width h*w.  Otherwise
    # keep the 4-D output and select the channel with a squeezed BlockSpec
    # dim (no extra HBM pass), computing on (bm, h, w) tiles.
    lane_dense = (hw % 128 == 0) or (C == 1)
    if lane_dense:
        spatial = (hw,)
        out_arr = output.reshape(m, C * hw)
        tgt_arr = target.reshape(m, hw)
    else:
        spatial = (h, w)
        out_arr = output
        tgt_arr = target

    # Rows per grid step: aim for ~target_block_bytes per input tile.
    row_bytes = hw * max(out_isz, tgt_isz)
    if block_rows is None:
        bm = max(1, int(target_block_bytes) // row_bytes)
    else:
        bm = max(1, int(block_rows))
    if bm >= m:
        bm = m                                    # full extent: always legal
    elif bm % 8 != 0:
        bm = min(m, max(8, (bm // 8) * 8))        # keep sublane dim 8-aligned

    # Sublane group kept in the lane-wide accumulators; drop to 1 row if
    # 8-deep accumulators would be too big for VMEM at very large h*w.
    g = 8 if (bm % 8 == 0 and 8 * hw * 4 <= 2 * 1024 * 1024) else 1

    nblk = pl.cdiv(m, bm)
    num_cores = max(1, min(int(num_cores), nblk))   # avoid useless phantoms
    blocks_per_core = pl.cdiv(nblk, num_cores)
    tail = (m % bm) != 0
    phantom = num_cores * blocks_per_core > nblk
    needs_guard = tail or phantom

    def _blk(p, j):
        # Clamp phantom blocks of the core split onto a valid block; their
        # accumulation is skipped inside the kernel.
        return jnp.minimum(p * blocks_per_core + j, nblk - 1)

    if lane_dense:
        in_specs = [
            pl.BlockSpec((bm, hw), lambda p, j: (_blk(p, j), chan)),
            pl.BlockSpec((bm, hw), lambda p, j: (_blk(p, j), 0)),
        ]
        acc_shape = jax.ShapeDtypeStruct((num_cores, g, hw), jnp.float32)
        acc_spec = pl.BlockSpec((1, g, hw), lambda p, j: (p, 0, 0))
    else:
        in_specs = [
            pl.BlockSpec((bm, None, h, w),
                         lambda p, j: (_blk(p, j), chan, 0, 0)),
            pl.BlockSpec((bm, h, w), lambda p, j: (_blk(p, j), 0, 0)),
        ]
        acc_shape = jax.ShapeDtypeStruct((num_cores, g, h, w), jnp.float32)
        acc_spec = pl.BlockSpec((1, g, h, w), lambda p, j: (p, 0, 0, 0))

    kernel = _make_kernel(bm, spatial, m, g, blocks_per_core, needs_guard)

    grid_spec = pltpu.PrefetchScalarGridSpec(
        num_scalar_prefetch=0,
        grid=(num_cores, blocks_per_core),
        in_specs=in_specs,
        out_specs=[acc_spec, acc_spec, acc_spec],
    )

    cp_kwargs = dict(dimension_semantics=("parallel", "arbitrary"))
    if vmem_limit_bytes is not None:
        cp_kwargs["vmem_limit_bytes"] = int(vmem_limit_bytes)

    tsum, msesum, msetsum = pl.pallas_call(
        kernel,
        out_shape=(acc_shape, acc_shape, acc_shape),
        grid_spec=grid_spec,
        compiler_params=pltpu.CompilerParams(**cp_kwargs),
        cost_estimate=pl.CostEstimate(
            flops=6 * m * hw,
            transcendentals=0,
            bytes_accessed=m * hw * (out_isz + tgt_isz),
        ),
    )(out_arr, tgt_arr)

    # Epilogue (plain JAX, tiny): cross-lane/core reduce + scalar combine.
    sum_t = jnp.sum(tsum)
    sum_mse = jnp.sum(msesum)
    sum_mset = jnp.sum(msetsum)

    n = jnp.float32(m) * jnp.float32(hw)
    mean = sum_t / n
    # Matches the PyTorch reference: an all-zero / all-one mask gives inf/nan
    # here exactly as the original module does.
    w0 = 1.0 / (1.0 - mean)
    w1 = 1.0 / mean
    # sum(mse * (1 - t)) == sum(mse) - sum(mse * t)
    loss = (w0 * (sum_mse - sum_mset) + w1 * sum_mset) / n
    return loss


def _reference_loss(output, c, target):
    """Plain-JAX mirror of the PyTorch forward for validation."""
    out_sel = output[:, c - 1, :, :]
    mse = (target - out_sel) ** 2
    mean = target.mean()
    c0 = 1.0 / (1.0 - mean)
    c1 = 1.0 / mean
    return (mse * (c0 * (1.0 - target) + c1 * target)).mean()


if __name__ == "__main__":
    key = jax.random.PRNGKey(0)

    def run_case(case_id, m, C, h, w, c, block_rows=None):
        k1, k2 = jax.random.split(jax.random.fold_in(key, case_id))
        output = jax.random.uniform(k1, (m, C, h, w), dtype=jnp.float32)
        # binary segmentation mask; mean strictly in (0, 1) so 1/mean finite
        target = jax.random.bernoulli(
            k2, p=0.3, shape=(m, h, w)).astype(jnp.float32)
        loss_fn = jax.jit(
            lambda o, t: segment_mse_loss(o, c, t, block_rows=block_rows))
        loss = jax.block_until_ready(loss_fn(output, target))
        ref = _reference_loss(output, c, target)
        assert jnp.allclose(loss, ref, rtol=1e-5, atol=1e-5), \
            (case_id, loss, ref)

    # Primary shape implied by the module: batch=2, channels=4, spatial=16.
    run_case(0, m=2, C=4, h=16, w=16, c=2)
    # Tail-block path (m not a multiple of block_rows): guarded accumulation.
    run_case(1, m=10, C=3, h=16, w=16, c=3, block_rows=8)
    # Lane-sparse fallback (h*w % 128 != 0): channel via squeezed BlockSpec.
    run_case(2, m=4, C=3, h=12, w=12, c=1)

    print("KERNEL_OK")
</pallas_src>

<mosaic_0001>
module attributes {stable_mosaic.version = 11 : i64} {
  func.func @kernel(%arg0: i32, %arg1: i32, %arg2: memref<2x256xf32, #tpu.memory_space<vmem>>, %arg3: memref<2x256xf32, #tpu.memory_space<vmem>>, %arg4: memref<1x1x256xf32, #tpu.memory_space<vmem>>, %arg5: memref<1x1x256xf32, #tpu.memory_space<vmem>>, %arg6: memref<1x1x256xf32, #tpu.memory_space<vmem>>) attributes {dimension_semantics = [#tpu.dimension_semantics<parallel>, #tpu.dimension_semantics<arbitrary>], iteration_bounds = array<i64: 1, 1>, scalar_prefetch = 0 : i64, scratch_operands = 0 : i64, tpu.core_type = #tpu.core_type<tc>, window_params = [{transform_indices = @transform_0, window_bounds = array<i64: 2, 256>}, {transform_indices = @transform_1, window_bounds = array<i64: 2, 256>}, {transform_indices = @transform_2, window_bounds = array<i64: 1, 1, 256>}, {transform_indices = @transform_3, window_bounds = array<i64: 1, 1, 256>}, {transform_indices = @transform_4, window_bounds = array<i64: 1, 1, 256>}]} {
    %c0_i32 = arith.constant 0 : i32
    %0 = arith.cmpi eq, %arg1, %c0_i32 : i32
    %1 = arith.extui %0 : i1 to i32
    %c0_i32_0 = arith.constant 0 : i32
    %2 = arith.cmpi ne, %1, %c0_i32_0 : i32
    scf.if %2 {
      %cst_24 = arith.constant 0.000000e+00 : f32
      %26 = vector.broadcast %cst_24 : f32 to vector<1x1x256xf32>
      %c0_25 = arith.constant 0 : index
      %c0_26 = arith.constant 0 : index
      %c0_27 = arith.constant 0 : index
      %27 = vector.load %arg4[%c0_25, %c0_26, %c0_27] : memref<1x1x256xf32, #tpu.memory_space<vmem>>, vector<1x1x256xf32>
      tpu.vector_store %arg4[%c0_25, %c0_26, %c0_27], %26 {strides = array<i32>} : memref<1x1x256xf32, #tpu.memory_space<vmem>>, vector<1x1x256xf32>,
      %cst_28 = arith.constant 0.000000e+00 : f32
      %28 = vector.broadcast %cst_28 : f32 to vector<1x1x256xf32>
      %c0_29 = arith.constant 0 : index
      %c0_30 = arith.constant 0 : index
      %c0_31 = arith.constant 0 : index
      %29 = vector.load %arg5[%c0_29, %c0_30, %c0_31] : memref<1x1x256xf32, #tpu.memory_space<vmem>>, vector<1x1x256xf32>
      tpu.vector_store %arg5[%c0_29, %c0_30, %c0_31], %28 {strides = array<i32>} : memref<1x1x256xf32, #tpu.memory_space<vmem>>, vector<1x1x256xf32>,
      %cst_32 = arith.constant 0.000000e+00 : f32
      %30 = vector.broadcast %cst_32 : f32 to vector<1x1x256xf32>
      %c0_33 = arith.constant 0 : index
      %c0_34 = arith.constant 0 : index
      %c0_35 = arith.constant 0 : index
      %31 = vector.load %arg6[%c0_33, %c0_34, %c0_35] : memref<1x1x256xf32, #tpu.memory_space<vmem>>, vector<1x1x256xf32>
      tpu.vector_store %arg6[%c0_33, %c0_34, %c0_35], %30 {strides = array<i32>} : memref<1x1x256xf32, #tpu.memory_space<vmem>>, vector<1x1x256xf32>,
    } else {
    }
    %c0 = arith.constant 0 : index
    %c0_1 = arith.constant 0 : index
    %3 = vector.load %arg2[%c0, %c0_1] : memref<2x256xf32, #tpu.memory_space<vmem>>, vector<2x256xf32>
    %c0_2 = arith.constant 0 : index
    %c0_3 = arith.constant 0 : index
    %4 = vector.load %arg3[%c0_2, %c0_3] : memref<2x256xf32, #tpu.memory_space<vmem>>, vector<2x256xf32>
    %5 = arith.subf %4, %3 : vector<2x256xf32>
    %6 = arith.mulf %5, %5 : vector<2x256xf32>
    %7 = arith.mulf %6, %4 : vector<2x256xf32>
    %cst = arith.constant dense<0.000000e+00> : vector<256xf32>
    %8 = vector.multi_reduction <add>, %4, %cst [0] : vector<2x256xf32> to vector<256xf32>
    %9 = vector.shape_cast %8 : vector<256xf32> to vector<1x256xf32>
    %cst_4 = arith.constant dense<0.000000e+00> : vector<256xf32>
    %10 = vector.multi_reduction <add>, %6, %cst_4 [0] : vector<2x256xf32> to vector<256xf32>
    %11 = vector.shape_cast %10 : vector<256xf32> to vector<1x256xf32>
    %cst_5 = arith.constant dense<0.000000e+00> : vector<256xf32>
    %12 = vector.multi_reduction <add>, %7, %cst_5 [0] : vector<2x256xf32> to vector<256xf32>
    %13 = vector.shape_cast %12 : vector<256xf32> to vector<1x256xf32>
    %c0_6 = arith.constant 0 : index
    %c0_7 = arith.constant 0 : index
    %c0_8 = arith.constant 0 : index
    %14 = vector.load %arg4[%c0_6, %c0_7, %c0_8] : memref<1x1x256xf32, #tpu.memory_space<vmem>>, vector<1x1x256xf32>
    %15 = vector.shape_cast %9 : vector<1x256xf32> to vector<1x1x256xf32>
    %16 = arith.addf %14, %15 : vector<1x1x256xf32>
    %c0_9 = arith.constant 0 : index
    %c0_10 = arith.constant 0 : index
    %c0_11 = arith.constant 0 : index
    %17 = vector.load %arg4[%c0_9, %c0_10, %c0_11] : memref<1x1x256xf32, #tpu.memory_space<vmem>>, vector<1x1x256xf32>
    tpu.vector_store %arg4[%c0_9, %c0_10, %c0_11], %16 {strides = array<i32>} : memref<1x1x256xf32, #tpu.memory_space<vmem>>, vector<1x1x256xf32>,
    %c0_12 = arith.constant 0 : index
    %c0_13 = arith.constant 0 : index
    %c0_14 = arith.constant 0 : index
    %18 = vector.load %arg5[%c0_12, %c0_13, %c0_14] : memref<1x1x256xf32, #tpu.memory_space<vmem>>, vector<1x1x256xf32>
    %19 = vector.shape_cast %11 : vector<1x256xf32> to vector<1x1x256xf32>
    %20 = arith.addf %18, %19 : vector<1x1x256xf32>
    %c0_15 = arith.constant 0 : index
    %c0_16 = arith.constant 0 : index
    %c0_17 = arith.constant 0 : index
    %21 = vector.load %arg5[%c0_15, %c0_16, %c0_17] : memref<1x1x256xf32, #tpu.memory_space<vmem>>, vector<1x1x256xf32>
    tpu.vector_store %arg5[%c0_15, %c0_16, %c0_17], %20 {strides = array<i32>} : memref<1x1x256xf32, #tpu.memory_space<vmem>>, vector<1x1x256xf32>,
    %c0_18 = arith.constant 0 : index
    %c0_19 = arith.constant 0 : index
    %c0_20 = arith.constant 0 : index
    %22 = vector.load %arg6[%c0_18, %c0_19, %c0_20] : memref<1x1x256xf32, #tpu.memory_space<vmem>>, vector<1x1x256xf32>
    %23 = vector.shape_cast %13 : vector<1x256xf32> to vector<1x1x256xf32>
    %24 = arith.addf %22, %23 : vector<1x1x256xf32>
    %c0_21 = arith.constant 0 : index
    %c0_22 = arith.constant 0 : index
    %c0_23 = arith.constant 0 : index
    %25 = vector.load %arg6[%c0_21, %c0_22, %c0_23] : memref<1x1x256xf32, #tpu.memory_space<vmem>>, vector<1x1x256xf32>
    tpu.vector_store %arg6[%c0_21, %c0_22, %c0_23], %24 {strides = array<i32>} : memref<1x1x256xf32, #tpu.memory_space<vmem>>, vector<1x1x256xf32>,
    return
  }
  func.func @transform_0(%arg0: i32, %arg1: i32) -> (i32, i32) {
    %c1_i32 = arith.constant 1 : i32
    %0 = arith.muli %arg0, %c1_i32 : i32
    %1 = arith.addi %0, %arg1 : i32
    %c0_i32 = arith.constant 0 : i32
    %2 = arith.minsi %1, %c0_i32 : i32
    %c1_i32_0 = arith.constant 1 : i32
    %c0_i32_1 = arith.constant 0 : i32
    return %2, %c1_i32_0 : i32, i32
  }
  func.func @transform_1(%arg0: i32, %arg1: i32) -> (i32, i32) {
    %c1_i32 = arith.constant 1 : i32
    %0 = arith.muli %arg0, %c1_i32 : i32
    %1 = arith.addi %0, %arg1 : i32
    %c0_i32 = arith.constant 0 : i32
    %2 = arith.minsi %1, %c0_i32 : i32
    %c0_i32_0 = arith.constant 0 : i32
    %c0_i32_1 = arith.constant 0 : i32
    return %2, %c0_i32_0 : i32, i32
  }
  func.func @transform_2(%arg0: i32, %arg1: i32) -> (i32, i32, i32) {
    %c0_i32 = arith.constant 0 : i32
    %c0_i32_0 = arith.constant 0 : i32
    %c0_i32_1 = arith.constant 0 : i32
    return %arg0, %c0_i32, %c0_i32_0 : i32, i32, i32
  }
  func.func @transform_3(%arg0: i32, %arg1: i32) -> (i32, i32, i32) {
    %c0_i32 = arith.constant 0 : i32
    %c0_i32_0 = arith.constant 0 : i32
    %c0_i32_1 = arith.constant 0 : i32
    return %arg0, %c0_i32, %c0_i32_0 : i32, i32, i32
  }
  func.func @transform_4(%arg0: i32, %arg1: i32) -> (i32, i32, i32) {
    %c0_i32 = arith.constant 0 : i32
    %c0_i32_0 = arith.constant 0 : i32
    %c0_i32_1 = arith.constant 0 : i32
    return %arg0, %c0_i32, %c0_i32_0 : i32, i32, i32
  }
}

</mosaic_0001>

<llo_original>
// kernel: _lambda_.1
$region0: #{_lambda_.1}
  #allocation0 [shape = 'u32[]', space=smem, size = 0x4, offset = 0x4, fixed_abs, tag = 'smem constant byte address 0x4 - core index']
  #allocation1 [shape = 'u32[144,128]{1,0:T(1,128)}', space=vmem, size = 0x12000, scoped, tag = 'internal scratch']
  %s0 = inlined_call_operand.vmem [shape: f32[2,1024], index: 0, kind: input, shape index: {}]
  %s1 = inlined_call_operand.vmem [shape: f32[2,256], index: 1, kind: input, shape index: {}]
  %s2 = inlined_call_operand.vmem [shape: f32[1,1,256], index: 2, kind: output, shape index: {0}]
  %s3 = inlined_call_operand.vmem [shape: f32[1,1,256], index: 3, kind: output, shape index: {1}]
  %s4 = inlined_call_operand.vmem [shape: f32[1,1,256], index: 4, kind: output, shape index: {2}]
  %5 = xla_tuple %s2, %s3, %s4
  %s6 = sld [smem:[#allocation0]]
  $region38: #{_lambda_.1} parent=0
    _
  %s8 = ssub.s32 1, %s6
  %s9 = scalar_select 0, %s8, %s6
  // Predicated region
  $region2: #{_lambda_.1} parent=0 // pred_check
    _
  $region3: #{_lambda_.1} parent=0 // pred_check_branch
    %11 = sbr.rel (0) target = $region5
  $region4: #{_lambda_.1} parent=0 // pred_region
    %s12 = sadd.s32 0, 0
    %p13 = scmp.lt.s32.totalorder %s12, 0
    %s14 = scalar_select %p13, %s12, 0
    %p15 = scmp.lt.s32.totalorder %s14, 0
    %s16 = scalar_select %p15, %s14, 0
    %s17 = smul.addr %s16, 8
    %s18 = sadd.s32 2, %s17
    %s19 = smul.addr %s18, 2
    %s20 = scalar_lea.vmem %s0, %s19
    %s21 = sadd.s32 0, 0
    %p22 = scmp.lt.s32.totalorder %s21, 0
    %s23 = scalar_select %p22, %s21, 0
  $region5: #{_lambda_.1} parent=0 // pred_fallthru
    _
  // Predicated region
  $region6: #{_lambda_.1} parent=0 // pred_check
    _
  $region7: #{_lambda_.1} parent=0 // pred_check_branch
    %25 = sbr.rel (0) target = $region9
  $region8: #{_lambda_.1} parent=0 // pred_region
    %s26 = sadd.s32 0, 0
    %p27 = scmp.lt.s32.totalorder %s26, 0
    %s28 = scalar_select %p27, %s26, 0
    %p29 = scmp.lt.s32.totalorder %s28, 0
    %s30 = scalar_select %p29, %s28, 0
    %s31 = smul.addr %s30, 2
    %s32 = smul.addr %s31, 2
    %s33 = scalar_lea.vmem %s1, %s32
    %s34 = sadd.s32 0, 0
    %p35 = scmp.lt.s32.totalorder %s34, 0
    %s36 = scalar_select %p35, %s34, 0
  $region9: #{_lambda_.1} parent=0 // pred_fallthru
    _
  %s37 = sadd.s32 0, 0
  %p38 = scmp.lt.s32.totalorder %s37, 0
  %s39 = scalar_select %p38, %s37, 0
  %p40 = scmp.lt.s32.totalorder %s39, 0
  %s41 = scalar_select %p40, %s39, 0
  %s42 = smul.addr %s41, 8
  %s43 = sadd.s32 2, %s42
  %s44 = smul.addr %s43, 2
  %s45 = scalar_lea.vmem %s0, %s44
  %s46 = sadd.s32 0, 0
  %p47 = scmp.lt.s32.totalorder %s46, 0
  %s48 = scalar_select %p47, %s46, 0
  %p49 = scmp.lt.s32.totalorder %s48, 0
  %s50 = scalar_select %p49, %s48, 0
  %s51 = smul.addr %s50, 2
  %s52 = smul.addr %s51, 2
  %s53 = scalar_lea.vmem %s1, %s52
  %s54 = sadd.s32 0, 0
  %p55 = scmp.lt.s32.totalorder %s54, 0
  %s56 = scalar_select %p55, %s54, 0
  %p57 = scmp.lt.s32.totalorder %s56, 0
  %s58 = scalar_select %p57, %s56, 0
  %s59 = smul.addr %s58, 8
  %s60 = sadd.s32 2, %s59
  %s61 = smul.addr %s60, 2
  %s62 = scalar_lea.vmem %s0, %s61
  %s63 = sadd.s32 0, 0
  %p64 = scmp.lt.s32.totalorder %s63, 0
  %s65 = scalar_select %p64, %s63, 0
  %s66 = sadd.s32 0, 0
  %p67 = scmp.lt.s32.totalorder %s66, 0
  %s68 = scalar_select %p67, %s66, 0
  %p69 = scmp.lt.s32.totalorder %s68, 0
  %s70 = scalar_select %p69, %s68, 0
  %s71 = smul.addr %s70, 2
  %s72 = smul.addr %s71, 2
  %s73 = scalar_lea.vmem %s1, %s72
  %s74 = sadd.s32 0, 0
  %p75 = scmp.lt.s32.totalorder %s74, 0
  %s76 = scalar_select %p75, %s74, 0
  %p77 = scmp.eq.s32.totalorder 0, 0
  // Predicated region
  $region10: #{_lambda_.1} parent=0 // pred_check
    %p78 = pneg %p77
  $region11: #{_lambda_.1} parent=0 // pred_check_branch
    %80 = sbr.rel (%p78) target = $region13
  $region12: #{_lambda_.1} parent=0 // pred_region
    %v81 = vlaneseq
    %vm82 = vcmp.ge.s32.totalorder %v81, 0
    %vm83 = vcmp.lt.s32.totalorder %v81, 256
    %vm84 = vmand %vm82, %vm83
    %85 = vst.msk [vmem:[%s2] sm:$0x3] %vm84, 0.0
    %86 = vst.msk [vmem:[%s3] sm:$0x3] %vm84, 0.0
    %87 = vst.msk [vmem:[%s4] sm:$0x3] %vm84, 0.0
  $region13: #{_lambda_.1} parent=0 // pred_fallthru
    _
  %v88 = vld [vmem:[%s62] sm:$0xf]
  %v89 = vld [vmem:[%s73] sm:$0xf]
  %v90 = vsub.f32 %v89, %v88
  %v91 = vmul.f32 %v90, %v90
  %v92 = vmul.f32 %v91, %v89
  %v95 = vunpack.c.l.s4 1983009808
  %v96 = vunpack.c.0.s8 %v95
  %v97 = vlaneseq
  %v98 = vshrl.u32 %v97, 7
  %v99 = vsub.s32 %v96, %v98
  %v100 = vrot.slane %v89, %v99
  %v101 = vcombine.high %v100, %v100
  %vm104 = vcmask 1041408
  %v105 = vsel %vm104, %v100, 0.0
  %v106 = vrot.slane %v105, 4
  %v107 = vadd.f32 %v105, %v106
  %v108 = vrot.slane %v107, 2
  %v109 = vadd.f32 %v107, %v108
  %v110 = vrot.slane %v109, 1
  %v111 = vadd.f32 %v109, %v110
  %v112 = vsel %vm104, %v101, 0.0
  %v113 = vrot.slane %v112, 4
  %v114 = vadd.f32 %v112, %v113
  %v115 = vrot.slane %v114, 2
  %v116 = vadd.f32 %v114, %v115
  %v117 = vrot.slane %v116, 1
  %v118 = vadd.f32 %v116, %v117
  %v121 = vunpack.c.l.s4 1983009808
  %v122 = vunpack.c.0.s8 %v121
  %v123 = vlaneseq
  %v124 = vshrl.u32 %v123, 7
  %v125 = vsub.s32 %v122, %v124
  %v126 = vrot.slane %v91, %v125
  %v127 = vcombine.high %v126, %v126
  %v130 = vsel %vm104, %v126, 0.0
  %v131 = vrot.slane %v130, 4
  %v132 = vadd.f32 %v130, %v131
  %v133 = vrot.slane %v132, 2
  %v134 = vadd.f32 %v132, %v133
  %v135 = vrot.slane %v134, 1
  %v136 = vadd.f32 %v134, %v135
  %v137 = vsel %vm104, %v127, 0.0
  %v138 = vrot.slane %v137, 4
  %v139 = vadd.f32 %v137, %v138
  %v140 = vrot.slane %v139, 2
  %v141 = vadd.f32 %v139, %v140
  %v142 = vrot.slane %v141, 1
  %v143 = vadd.f32 %v141, %v142
  %v146 = vunpack.c.l.s4 1983009808
  %v147 = vunpack.c.0.s8 %v146
  %v148 = vlaneseq
  %v149 = vshrl.u32 %v148, 7
  %v150 = vsub.s32 %v147, %v149
  %v151 = vrot.slane %v92, %v150
  %v152 = vcombine.high %v151, %v151
  %v155 = vsel %vm104, %v151, 0.0
  %v156 = vrot.slane %v155, 4
  %v157 = vadd.f32 %v155, %v156
  %v158 = vrot.slane %v157, 2
  %v159 = vadd.f32 %v157, %v158
  %v160 = vrot.slane %v159, 1
  %v161 = vadd.f32 %v159, %v160
  %v162 = vsel %vm104, %v152, 0.0
  %v163 = vrot.slane %v162, 4
  %v164 = vadd.f32 %v162, %v163
  %v165 = vrot.slane %v164, 2
  %v166 = vadd.f32 %v164, %v165
  %v167 = vrot.slane %v166, 1
  %v168 = vadd.f32 %v166, %v167
  %v169 = vld [vmem:[%s2] sm:$0x3]
  %v172 = vcombine.low %v111, %v118
  %v174 = vunpack.c.l.s4 1966171168
  %v175 = vunpack.c.0.s8 %v174
  %v176 = vlaneseq
  %v177 = vshrl.u32 %v176, 7
  %v178 = vsub.s32 %v175, %v177
  %v179 = vrot.slane %v172, %v178
  %v181 = vunpack.c.l.s4 1966171168
  %v182 = vunpack.c.0.s8 %v181
  %v183 = vlaneseq
  %v184 = vshrl.u32 %v183, 7
  %v185 = vsub.s32 %v182, %v184
  %v186 = vrot.slane %v179, %v185
  %v188 = vadd.f32 %v169, %v186
  %v189 = vlaneseq
  %vm190 = vcmp.ge.s32.totalorder %v189, 0
  %vm191 = vcmp.lt.s32.totalorder %v189, 256
  %vm192 = vmand %vm190, %vm191
  %193 = vst.msk [vmem:[%s2] sm:$0x3] %vm192, %v188
  %v194 = vld [vmem:[%s3] sm:$0x3]
  %v197 = vcombine.low %v136, %v143
  %v199 = vunpack.c.l.s4 1966171168
  %v200 = vunpack.c.0.s8 %v199
  %v201 = vlaneseq
  %v202 = vshrl.u32 %v201, 7
  %v203 = vsub.s32 %v200, %v202
  %v204 = vrot.slane %v197, %v203
  %v206 = vunpack.c.l.s4 1966171168
  %v207 = vunpack.c.0.s8 %v206
  %v208 = vlaneseq
  %v209 = vshrl.u32 %v208, 7
  %v210 = vsub.s32 %v207, %v209
  %v211 = vrot.slane %v204, %v210
  %v213 = vadd.f32 %v194, %v211
  %214 = vst.msk [vmem:[%s3] sm:$0x3] %vm192, %v213
  %v215 = vld [vmem:[%s4] sm:$0x3]
  %v218 = vcombine.low %v161, %v168
  %v220 = vunpack.c.l.s4 1966171168
  %v221 = vunpack.c.0.s8 %v220
  %v222 = vlaneseq
  %v223 = vshrl.u32 %v222, 7
  %v224 = vsub.s32 %v221, %v223
  %v225 = vrot.slane %v218, %v224
  %v227 = vunpack.c.l.s4 1966171168
  %v228 = vunpack.c.0.s8 %v227
  %v229 = vlaneseq
  %v230 = vshrl.u32 %v229, 7
  %v231 = vsub.s32 %v228, %v230
  %v232 = vrot.slane %v225, %v231
  %v234 = vadd.f32 %v215, %v232
  %235 = vst.msk [vmem:[%s4] sm:$0x3] %vm192, %v234
  // Predicated region
  $region14: #{_lambda_.1} parent=0 // pred_check
    _
  $region15: #{_lambda_.1} parent=0 // pred_check_branch
    %237 = sbr.rel (0) target = $region17
  $region16: #{_lambda_.1} parent=0 // pred_region
    _
  $region17: #{_lambda_.1} parent=0 // pred_fallthru
    _
  // Predicated region
  $region18: #{_lambda_.1} parent=0 // pred_check
    _
  $region19: #{_lambda_.1} parent=0 // pred_check_branch
    %239 = sbr.rel (0) target = $region21
  $region20: #{_lambda_.1} parent=0 // pred_region
    _
  $region21: #{_lambda_.1} parent=0 // pred_fallthru
    _
  // Predicated region
  $region22: #{_lambda_.1} parent=0 // pred_check
    _
  $region23: #{_lambda_.1} parent=0 // pred_check_branch
    %241 = sbr.rel (0) target = $region25
  $region24: #{_lambda_.1} parent=0 // pred_region
    _
  $region25: #{_lambda_.1} parent=0 // pred_fallthru
    _
  // Predicated region
  $region26: #{_lambda_.1} parent=0 // pred_check
    _
  $region27: #{_lambda_.1} parent=0 // pred_check_branch
    %243 = sbr.rel (0) target = $region29
  $region28: #{_lambda_.1} parent=0 // pred_region
    _
  $region29: #{_lambda_.1} parent=0 // pred_fallthru
    _
  // Predicated region
  $region30: #{_lambda_.1} parent=0 // pred_check
    _
  $region31: #{_lambda_.1} parent=0 // pred_check_branch
    %245 = sbr.rel (0) target = $region33
  $region32: #{_lambda_.1} parent=0 // pred_region
    _
  $region33: #{_lambda_.1} parent=0 // pred_fallthru
    _
  // Predicated region
  $region34: #{_lambda_.1} parent=0 // pred_check
    _
  $region35: #{_lambda_.1} parent=0 // pred_check_branch
    %247 = sbr.rel (0) target = $region37
  $region36: #{_lambda_.1} parent=0 // pred_region
    _
  $region37: #{_lambda_.1} parent=0 // pred_fallthru
    _

</llo_original>
